<compile_context>
chip_gen: v7x
topology: tpu7x:2x2x1
jax: 0.10.0
libtpu: 0.0.40
codegen_flags: <defaults>
</compile_context>

<pallas_src>
import math
from functools import partial

import jax
import jax.numpy as jnp
from jax import lax
from jax.experimental import pallas as pl
from jax.experimental.pallas import tpu as pltpu

TIME_EMBED_DIM = 128 * 2  # 256
GN_GROUPS = 32
GN_EPS = 1e-5

W_BLOCK_BUDGET = 4 * 1024 * 1024   # int8 weight-block bytes per pipeline buffer
VMEM_LIMIT = 32 * 1024 * 1024      # safe scoped-VMEM limit on v5e / v6e / v7x


def _round_up(x, m):
    return (x + m - 1) // m * m


# --------------------------------------------------------------------------
# Pallas kernels
# --------------------------------------------------------------------------
def _mm_kernel(x_ref, w_ref, s_ref, b_ref, o_ref):
    # y = x @ dequant(W) + b  ==  (x @ W_int8) * scale + b
    w = w_ref[0].astype(jnp.bfloat16)                 # int8 -> bf16 (VPU)
    acc = jnp.dot(x_ref[...], w, preferred_element_type=jnp.float32)
    o_ref[...] = (acc * s_ref[...] + b_ref[...]).astype(o_ref.dtype)


def _mm_skip_kernel(x_ref, w_ref, s_ref, b_ref, r_ref, o_ref):
    # same as _mm_kernel + fused residual add (r tile matches the output tile)
    w = w_ref[0].astype(jnp.bfloat16)
    acc = jnp.dot(x_ref[...], w, preferred_element_type=jnp.float32)
    y = acc * s_ref[...] + b_ref[...] + r_ref[...].astype(jnp.float32)
    o_ref[...] = y.astype(o_ref.dtype)


def _gn_kernel(x_ref, g_ref, b_ref, ind_ref, indT_ref, o_ref, *,
               count, eps, silu):
    x = x_ref[0].astype(jnp.float32)                      # (HW, C)
    sum_c = jnp.sum(x, axis=0, keepdims=True)             # (1, C)
    sq_c = jnp.sum(x * x, axis=0, keepdims=True)          # (1, C)
    sum_g = jnp.dot(sum_c, ind_ref[...], preferred_element_type=jnp.float32)
    sq_g = jnp.dot(sq_c, ind_ref[...], preferred_element_type=jnp.float32)
    mean_g = sum_g / count
    var_g = jnp.maximum(sq_g / count - mean_g * mean_g, 0.0)   # clamp (cancellation)
    mean_c = jnp.dot(mean_g, indT_ref[...], preferred_element_type=jnp.float32)
    var_c = jnp.dot(var_g, indT_ref[...], preferred_element_type=jnp.float32)
    y = (x - mean_c) * lax.rsqrt(var_c + eps)
    y = y * g_ref[...] + b_ref[...]
    if silu:
        y = y * jax.nn.sigmoid(y)
    o_ref[0] = y.astype(o_ref.dtype)


def _attn_kernel(q_ref, k_ref, v_ref, o_ref, *, scale):
    q = q_ref[0].astype(jnp.float32)
    k = k_ref[0].astype(jnp.float32)
    v = v_ref[0].astype(jnp.float32)                      # (HW, C)
    s = lax.dot_general(q, k, (((1,), (1,)), ((), ())),
                        preferred_element_type=jnp.float32) * scale  # (HW, HW)
    s = s - jnp.max(s, axis=-1, keepdims=True)
    p = jnp.exp(s)
    p = p / jnp.sum(p, axis=-1, keepdims=True)
    o_ref[0] = jnp.dot(p, v, preferred_element_type=jnp.float32).astype(o_ref.dtype)


# --------------------------------------------------------------------------
# Matmul wrapper (the hot path): int8 weights, bf16 x, f32 accumulate
# --------------------------------------------------------------------------
def _pick_tn(Kp, Np):
    """Largest N tile whose int8 weight block fits the per-buffer budget;
    prefer an even N-block count so v7x's two TensorCores split j evenly."""
    cands = [tn for tn in (512, 384, 256, 128)
             if Np % tn == 0 and Kp * tn <= W_BLOCK_BUDGET]
    if not cands:
        return 128
    even = [tn for tn in cands if (Np // tn) % 2 == 0]
    return even[0] if even else cands[0]


def prep_matmul(w2d, b, *, kh=1, kw=1):
    """Quantize (int8, per-output-channel scale), pad and pre-tile ONCE at init."""
    K, N = w2d.shape
    Kp = _round_up(K, 128)
    Np = _round_up(N, 128)
    tn = _pick_tn(Kp, Np)
    nj = Np // tn
    w2d = w2d.astype(jnp.float32)
    scale = jnp.maximum(jnp.max(jnp.abs(w2d), axis=0), 1e-8) / 127.0     # (N,)
    q = jnp.clip(jnp.round(w2d / scale[None, :]), -127.0, 127.0).astype(jnp.int8)
    q = jnp.pad(q, ((0, Kp - K), (0, Np - N)))
    wq = jnp.transpose(q.reshape(Kp, nj, tn), (1, 0, 2))  # (nj, Kp, tn) contiguous blocks
    sp = jnp.pad(scale, (0, Np - N), constant_values=1.0).reshape(1, Np)
    bp = jnp.pad(b.astype(jnp.float32), (0, Np - N)).reshape(1, Np)
    return {"w": wq, "s": sp, "b": bp, "kh": kh, "kw": kw,
            "K": K, "N": N, "Kp": Kp, "Np": Np, "tn": tn}


def matmul_bias(x, p, *, extra_bias=None, skip=None, out_dtype=jnp.bfloat16):
    """y = x @ W + b (+ extra per-channel bias) (+ skip slab).

    tm = M (M in {1..528} for this net -> no M padding / no wasted MXU rows),
    tk = Kp (single K block -> no accumulator scratch), tn fixed at init so the
    int8 weight block fits VMEM and the N-block count is even.
    """
    M, K = x.shape
    assert K == p["K"], (K, p["K"])
    Kp, Np, N, tn = p["Kp"], p["Np"], p["N"], p["tn"]
    x = x.astype(jnp.bfloat16)
    if Kp > K:
        x = jnp.pad(x, ((0, 0), (0, Kp - K)))
    if M <= 1024:                     # all matmuls in this net
        tm, Mp = M, M
    else:                             # generic fallback
        tm, Mp = 256, _round_up(M, 256)
        x = jnp.pad(x, ((0, Mp - M), (0, 0)))

    bias = p["b"]
    if extra_bias is not None:        # fused time-embedding add (per-output-channel)
        eb = extra_bias.reshape(1, -1).astype(jnp.float32)
        if eb.shape[1] < Np:
            eb = jnp.pad(eb, ((0, 0), (0, Np - eb.shape[1])))
        bias = bias + eb

    in_specs = [
        pl.BlockSpec((tm, Kp), lambda i, j: (i, 0)),
        pl.BlockSpec((1, Kp, tn), lambda i, j: (j, 0, 0)),
        pl.BlockSpec((1, tn), lambda i, j: (0, j)),
        pl.BlockSpec((1, tn), lambda i, j: (0, j)),
    ]
    args = [x, p["w"], p["s"], bias]
    kernel = _mm_kernel
    if skip is not None:              # fused residual add
        r = skip
        if r.shape[0] < Mp or r.shape[1] < Np:
            r = jnp.pad(r, ((0, Mp - r.shape[0]), (0, Np - r.shape[1])))
        in_specs.append(pl.BlockSpec((tm, tn), lambda i, j: (i, j)))
        args.append(r)
        kernel = _mm_skip_kernel

    out = pl.pallas_call(
        kernel,
        out_shape=jax.ShapeDtypeStruct((Mp, Np), out_dtype),
        grid=(Mp // tm, Np // tn),
        in_specs=in_specs,
        out_specs=pl.BlockSpec((tm, tn), lambda i, j: (i, j)),
        compiler_params=pltpu.CompilerParams(
            dimension_semantics=("parallel", "parallel"),
            vmem_limit_bytes=VMEM_LIMIT),
    )(*args)
    if Mp > M or Np > N:
        out = out[:M, :N]
    return out


# --------------------------------------------------------------------------
# GroupNorm / attention wrappers
# --------------------------------------------------------------------------
_GN_IND_CACHE = {}


def _gn_indicators(C, groups):
    key = (C, groups)
    if key not in _GN_IND_CACHE:
        ind = (jnp.arange(C)[:, None] // (C // groups)
               == jnp.arange(groups)[None, :]).astype(jnp.float32)   # (C, G)
        _GN_IND_CACHE[key] = (ind, jnp.transpose(ind))
    return _GN_IND_CACHE[key]


def group_norm(x, gamma, beta, *, groups=GN_GROUPS, eps=GN_EPS, silu=False):
    N, H, W, C = x.shape
    HW = H * W
    Cg = C // groups
    x2 = x.reshape(N, HW, C)
    ind, indT = _gn_indicators(C, groups)
    out = pl.pallas_call(
        partial(_gn_kernel, count=float(HW * Cg), eps=eps, silu=silu),
        out_shape=jax.ShapeDtypeStruct((N, HW, C), jnp.bfloat16),
        grid=(N,),
        in_specs=[
            pl.BlockSpec((1, HW, C), lambda n: (n, 0, 0)),
            pl.BlockSpec((1, C), lambda n: (0, 0)),
            pl.BlockSpec((1, C), lambda n: (0, 0)),
            pl.BlockSpec((C, groups), lambda n: (0, 0)),
            pl.BlockSpec((groups, C), lambda n: (0, 0)),
        ],
        out_specs=pl.BlockSpec((1, HW, C), lambda n: (n, 0, 0)),
    )(x2, gamma, beta, ind, indT)
    return out.reshape(N, H, W, C)


def spatial_attention(q, k, v):
    # General path (unused in this net: both attention layers run at 1x1).
    N, H, W, C = q.shape
    HW = H * W
    scale = 1.0 / math.sqrt(C)
    qs, ks, vs = (a.reshape(N, HW, C) for a in (q, k, v))
    out = pl.pallas_call(
        partial(_attn_kernel, scale=scale),
        out_shape=jax.ShapeDtypeStruct((N, HW, C), jnp.bfloat16),
        grid=(N,),
        in_specs=[pl.BlockSpec((1, HW, C), lambda n: (n, 0, 0))] * 3,
        out_specs=pl.BlockSpec((1, HW, C), lambda n: (n, 0, 0)),
    )(qs, ks, vs)
    return out.reshape(N, H, W, C)


# --------------------------------------------------------------------------
# Layers (JAX glue around the kernels)
# --------------------------------------------------------------------------
def conv2d(x, p, *, stride=1, padding=1, extra_bias=None, skip=None,
           out_dtype=jnp.bfloat16):
    """NHWC conv via im2col (bf16 glue) + Pallas matmul (hot path)."""
    # TODO(synk): implicit im2col inside the kernel (tap axis in the index_map)
    # would remove the materialized patch slab; activations here are tiny so
    # the bf16 im2col glue is kept.
    N, H, W, Cin = x.shape
    kh, kw = p["kh"], p["kw"]
    xb = x.astype(jnp.bfloat16)
    if kh == 1 and kw == 1 and stride == 1 and padding == 0:
        X = xb.reshape(N * H * W, Cin)
        Hout, Wout = H, W
    else:
        xp = jnp.pad(xb, ((0, 0), (padding, padding), (padding, padding), (0, 0)))
        Hout = (H + 2 * padding - kh) // stride + 1
        Wout = (W + 2 * padding - kw) // stride + 1
        cols = [xp[:, dy:dy + stride * Hout:stride,
                   dx:dx + stride * Wout:stride, :]
                for dy in range(kh) for dx in range(kw)]
        patches = jnp.concatenate(cols, axis=-1) if len(cols) > 1 else cols[0]
        X = patches.reshape(N * Hout * Wout, kh * kw * Cin)
    Y = matmul_bias(X, p, extra_bias=extra_bias, skip=skip, out_dtype=out_dtype)
    return Y.reshape(N, Hout, Wout, p["N"])


def resblock(x, t_emb, p):
    B = x.shape[0]
    h = group_norm(x, p["norm1"]["g"], p["norm1"]["b"], silu=True)
    e = t_emb * jax.nn.sigmoid(t_emb)                       # SiLU (tiny glue)
    e = matmul_bias(e, p["emb"], out_dtype=jnp.float32)     # (B, Cout)
    if B == 1:
        # emb add fused into conv1's bias row (exactly equivalent at batch=1)
        h = conv2d(h, p["conv1"], stride=1, padding=1, extra_bias=e)
    else:
        h = conv2d(h, p["conv1"], stride=1, padding=1)
        h = h + e[:, None, None, :].astype(h.dtype)
    h = group_norm(h, p["norm2"]["g"], p["norm2"]["b"], silu=True)
    if "skip" in p:
        xs = conv2d(x, p["skip"], stride=1, padding=0)
    else:
        xs = x
    skip2d = xs.reshape(-1, xs.shape[-1])
    return conv2d(h, p["conv2"], stride=1, padding=1, skip=skip2d)  # residual fused


def attention_layer(x, p):
    B, H, W, C = x.shape
    h = group_norm(x, p["norm"]["g"], p["norm"]["b"], silu=False)
    if H * W == 1:
        # softmax over a single key is identically 1 => attn(q,k,v) == v
        # (bit-exact shortcut; skips q/k convs + attention kernel entirely)
        a = conv2d(h, p["v"], stride=1, padding=0)
    else:
        q = conv2d(h, p["q"], stride=1, padding=0)
        k = conv2d(h, p["k"], stride=1, padding=0)
        v = conv2d(h, p["v"], stride=1, padding=0)
        a = spatial_attention(q, k, v)
    skip2d = x.reshape(B * H * W, C)
    return conv2d(a, p["proj"], stride=1, padding=0, skip=skip2d)   # residual fused


def downsample(x, p):
    return conv2d(x, p["conv"], stride=2, padding=1)


def upsample_nearest2x(x):
    return jnp.repeat(jnp.repeat(x, 2, axis=1), 2, axis=2)


def constant_pad(x, left, right, top, bottom):
    # ConstantPad2d((l, r, t, b)) on NCHW == pad W by (l, r), H by (t, b).
    return jnp.pad(x, ((0, 0), (top, bottom), (left, right), (0, 0)))


# --------------------------------------------------------------------------
# Parameter construction (deterministic, in-script, quantized / pre-tiled)
# --------------------------------------------------------------------------
class ParamGen:
    def __init__(self, key):
        self._key = key
        self._i = 0

    def normal(self, shape, std):
        self._i += 1
        k = jax.random.fold_in(self._key, self._i)
        return std * jax.random.normal(k, shape, jnp.float32)


def init_conv(pg, kh, kw, cin, cout):
    std = 1.0 / math.sqrt(kh * kw * cin)
    w = pg.normal((kh * kw * cin, cout), std)   # already in (K, N) matmul layout
    b = pg.normal((cout,), std)
    return prep_matmul(w, b, kh=kh, kw=kw)


def init_linear(pg, din, dout):
    std = 1.0 / math.sqrt(din)
    return prep_matmul(pg.normal((din, dout), std), pg.normal((dout,), std))


def init_gn(c):
    return {"g": jnp.ones((1, c), jnp.float32), "b": jnp.zeros((1, c), jnp.float32)}


def init_resblock(pg, cin, cout):
    p = {"norm1": init_gn(cin),
         "conv1": init_conv(pg, 3, 3, cin, cout),
         "emb": init_linear(pg, TIME_EMBED_DIM, cout),
         "norm2": init_gn(cout),
         "conv2": init_conv(pg, 3, 3, cout, cout)}
    if cin != cout:
        p["skip"] = init_conv(pg, 1, 1, cin, cout)
    return p


def init_attn(pg, c):
    return {"norm": init_gn(c),
            "q": init_conv(pg, 1, 1, c, c),
            "k": init_conv(pg, 1, 1, c, c),
            "v": init_conv(pg, 1, 1, c, c),
            "proj": init_conv(pg, 1, 1, c, c)}


def init_down(pg, c):
    return {"conv": init_conv(pg, 3, 3, c, c)}


def init_params(key):
    pg = ParamGen(key)
    params = {"enc_conv1": init_conv(pg, 3, 3, 38, 256)}
    params["enc_blocks_1"] = [
        ("res", init_resblock(pg, 256, 256)),
        ("res", init_resblock(pg, 256, 256)),
        ("down", init_down(pg, 256)),
        ("res", init_resblock(pg, 256, 256)),
        ("res", init_resblock(pg, 256, 512)),
        ("down", init_down(pg, 512)),
        ("res", init_resblock(pg, 512, 512)),
        ("res", init_resblock(pg, 512, 768)),
        ("down", init_down(pg, 768)),
        ("res", init_resblock(pg, 768, 768)),
        ("res", init_resblock(pg, 768, 1024)),
        ("down", init_down(pg, 1024)),
    ]
    params["enc_blocks_2"] = [
        ("res", init_resblock(pg, 1024, 1024)),
        ("res", init_resblock(pg, 1024, 1024)),
        ("attn", init_attn(pg, 1024)),
        ("res", init_resblock(pg, 1024, 1024)),
        ("res", init_resblock(pg, 1024, 1024)),
        ("attn", init_attn(pg, 1024)),
    ]
    params["decoder"] = [
        ("conv", init_conv(pg, 3, 3, 1024, 1024)),
        ("res", init_resblock(pg, 1024, 768)),
        ("res", init_resblock(pg, 768, 768)),
        ("res", init_resblock(pg, 768, 768)),
        ("up", None), ("pad", (0, 1, 0, 0)),
        ("res", init_resblock(pg, 768, 512)),
        ("res", init_resblock(pg, 512, 512)),
        ("res", init_resblock(pg, 512, 512)),
        ("up", None), ("pad", (0, 0, 0, 1)),
        ("res", init_resblock(pg, 512, 512)),
        ("res", init_resblock(pg, 512, 512)),
        ("res", init_resblock(pg, 512, 512)),
        ("up", None), ("pad", (0, 0, 0, 1)),
        ("res", init_resblock(pg, 512, 256)),
        ("res", init_resblock(pg, 256, 256)),
        ("res", init_resblock(pg, 256, 256)),
        ("up", None),
        ("res", init_resblock(pg, 256, 256)),
        ("res", init_resblock(pg, 256, 256)),
        ("conv", init_conv(pg, 3, 3, 256, 38)),
    ]
    return params


def run_blocks(x, t_emb, blocks):
    for kind, p in blocks:
        if kind == "res":
            x = resblock(x, t_emb, p)
        elif kind == "attn":
            x = attention_layer(x, p)
        elif kind == "down":
            x = downsample(x, p)
        elif kind == "conv":
            x = conv2d(x, p, stride=1, padding=1)
        elif kind == "up":
            x = upsample_nearest2x(x)
        elif kind == "pad":
            l, r, t_, b_ = p
            x = constant_pad(x, l, r, t_, b_)
    return x


def bicnn_forward(params, x_nchw, t):
    # layout: NCHW in / NCHW out (PyTorch convention); NHWC + bf16 internally.
    x = jnp.transpose(x_nchw, (0, 2, 3, 1)).astype(jnp.float32)
    # t.unsqueeze(1).repeat(1, time_embed_dim)
    t_emb = jnp.repeat(t[:, None].astype(jnp.float32), TIME_EMBED_DIM, axis=1)
    # TODO(synk): self.time_embed (TimestepEmbedder) is built in __init__ but
    # never called in BiCNN.forward, so it is intentionally omitted here.
    h = conv2d(x, params["enc_conv1"], stride=1, padding=1)
    h = run_blocks(h, t_emb, params["enc_blocks_1"])
    h = run_blocks(h, t_emb, params["enc_blocks_2"])
    h = run_blocks(h, t_emb, params["decoder"])
    return jnp.transpose(h.astype(jnp.float32), (0, 3, 1, 2))


if __name__ == "__main__":
    key = jax.random.PRNGKey(0)
    kp, kx, kt = jax.random.split(key, 3)
    params = init_params(kp)
    x = jax.random.normal(kx, (1, 38, 16, 16), jnp.float32)   # NCHW, like PyTorch
    t = jax.random.normal(kt, (1,), jnp.float32)
    out = bicnn_forward(params, x, t)
    out = jax.block_until_ready(out)
    # 16x16 -> 4x downsample -> 1x1 -> decoder upsamples/pads -> 22x24
    assert out.shape == (1, 38, 22, 24), out.shape
    assert bool(jnp.all(jnp.isfinite(out)))
    print("KERNEL_OK")
</pallas_src>

<mosaic_0001>
module attributes {stable_mosaic.version = 11 : i64} {
  func.func @_mm_kernel(%arg0: i32, %arg1: i32, %arg2: memref<256x384xbf16, #tpu.memory_space<vmem>>, %arg3: memref<1x384x128xi8, #tpu.memory_space<vmem>>, %arg4: memref<1x128xf32, #tpu.memory_space<vmem>>, %arg5: memref<1x128xf32, #tpu.memory_space<vmem>>, %arg6: memref<256x128xbf16, #tpu.memory_space<vmem>>) attributes {dimension_semantics = [#tpu.dimension_semantics<parallel>, #tpu.dimension_semantics<parallel>], iteration_bounds = array<i64: 1, 2>, scalar_prefetch = 0 : i64, scratch_operands = 0 : i64, tpu.core_type = #tpu.core_type<tc>, window_params = [{transform_indices = @transform_0, window_bounds = array<i64: 256, 384>}, {transform_indices = @transform_1, window_bounds = array<i64: 1, 384, 128>}, {transform_indices = @transform_2, window_bounds = array<i64: 1, 128>}, {transform_indices = @transform_3, window_bounds = array<i64: 1, 128>}, {transform_indices = @transform_4, window_bounds = array<i64: 256, 128>}]} {
    %c0 = arith.constant 0 : index
    %c0_0 = arith.constant 0 : index
    %c0_1 = arith.constant 0 : index
    %0 = vector.load %arg3[%c0, %c0_0, %c0_1] : memref<1x384x128xi8, #tpu.memory_space<vmem>>, vector<1x384x128xi8>
    %1 = vector.shape_cast %0 : vector<1x384x128xi8> to vector<384x128xi8>
    %2 = arith.sitofp %1 : vector<384x128xi8> to vector<384x128xbf16>
    %c0_2 = arith.constant 0 : index
    %c0_3 = arith.constant 0 : index
    %3 = vector.load %arg2[%c0_2, %c0_3] : memref<256x384xbf16, #tpu.memory_space<vmem>>, vector<256x384xbf16>
    %cst = arith.constant dense<0.000000e+00> : vector<256x128xf32>
    %4 = tpu.matmul %3, %2, %cst {dimension_numbers = #tpu.dot_dimension_numbers<[1], [0], [0], [1], [0, 0, 1, 1], [], []>} : vector<256x384xbf16>, vector<384x128xbf16>, vector<256x128xf32> -> vector<256x128xf32>
    %c0_4 = arith.constant 0 : index
    %c0_5 = arith.constant 0 : index
    %5 = vector.load %arg4[%c0_4, %c0_5] : memref<1x128xf32, #tpu.memory_space<vmem>>, vector<1x128xf32>
    %6 = vector.broadcast %5 : vector<1x128xf32> to vector<256x128xf32>
    %7 = arith.mulf %4, %6 : vector<256x128xf32>
    %c0_6 = arith.constant 0 : index
    %c0_7 = arith.constant 0 : index
    %8 = vector.load %arg5[%c0_6, %c0_7] : memref<1x128xf32, #tpu.memory_space<vmem>>, vector<1x128xf32>
    %9 = vector.broadcast %8 : vector<1x128xf32> to vector<256x128xf32>
    %10 = arith.addf %7, %9 : vector<256x128xf32>
    %11 = arith.truncf %10 : vector<256x128xf32> to vector<256x128xbf16>
    %c0_8 = arith.constant 0 : index
    %c0_9 = arith.constant 0 : index
    %12 = vector.load %arg6[%c0_8, %c0_9] : memref<256x128xbf16, #tpu.memory_space<vmem>>, vector<256x128xbf16>
    tpu.vector_store %arg6[%c0_8, %c0_9], %11 {strides = array<i32>} : memref<256x128xbf16, #tpu.memory_space<vmem>>, vector<256x128xbf16>,
    return
  }
  func.func @transform_0(%arg0: i32, %arg1: i32) -> (i32, i32) {
    %c0_i32 = arith.constant 0 : i32
    %c0_i32_0 = arith.constant 0 : i32
    return %arg0, %c0_i32 : i32, i32
  }
  func.func @transform_1(%arg0: i32, %arg1: i32) -> (i32, i32, i32) {
    %c0_i32 = arith.constant 0 : i32
    %c0_i32_0 = arith.constant 0 : i32
    %c0_i32_1 = arith.constant 0 : i32
    return %arg1, %c0_i32, %c0_i32_0 : i32, i32, i32
  }
  func.func @transform_2(%arg0: i32, %arg1: i32) -> (i32, i32) {
    %c0_i32 = arith.constant 0 : i32
    %c0_i32_0 = arith.constant 0 : i32
    return %c0_i32, %arg1 : i32, i32
  }
  func.func @transform_3(%arg0: i32, %arg1: i32) -> (i32, i32) {
    %c0_i32 = arith.constant 0 : i32
    %c0_i32_0 = arith.constant 0 : i32
    return %c0_i32, %arg1 : i32, i32
  }
  func.func @transform_4(%arg0: i32, %arg1: i32) -> (i32, i32) {
    %c0_i32 = arith.constant 0 : i32
    return %arg0, %arg1 : i32, i32
  }
}

</mosaic_0001>

<llo_original>
// kernel: tpu_custom_call.1
$region0: #{tpu_custom_call.1}
  #allocation0 [shape = 'u32[]', space=smem, size = 0x4, offset = 0x4, fixed_abs, tag = 'smem constant byte address 0x4 - core index']
  #allocation1 [shape = 'u32[144,128]{1,0:T(1,128)}', space=vmem, size = 0x12000, scoped, tag = 'internal scratch']
  %s0 = inlined_call_operand.hbm [shape: bf16[256,384], index: 0, kind: input, shape index: {}]
  %s1 = inlined_call_operand.hbm [shape: s8[2,384,128], index: 1, kind: input, shape index: {}]
  %s2 = inlined_call_operand.vmem [shape: f32[1,256], index: 2, kind: input, shape index: {}]
  %s3 = inlined_call_operand.vmem [shape: f32[1,256], index: 3, kind: input, shape index: {}]
  %s4 = inlined_call_operand.hbm [shape: bf16[256,256], index: 4, kind: output, shape index: {}]
  %s5 = sld [smem:[#allocation0]]
  $region57: #{tpu_custom_call.1} parent=0
    _
  %s7 = ssub.s32 1, %s5
  %s8 = scalar_select 0, %s7, %s5
  $region1: #{tpu_custom_call.1} parent=0
    #allocation2 [shape = 'u8[196608]{0}', space=vmem, size = 0x30000, scoped, tag = 'input window, operand 0, single buffered']
    #allocation3 [shape = 's32[2]{0}', space=sflag, size = 0x8, scoped, tag = 'scoped memory for tpu_custom_call.1']
    #allocation4 [shape = 's32[2]{0}', space=sflag, size = 0x8, scoped, tag = 'scoped memory for tpu_custom_call.1']
    #allocation5 [shape = 'u8[98304]{0}', space=vmem, size = 0x18000, scoped, tag = 'input window, operand 1']
    #allocation6 [shape = 's32[2]{0}', space=sflag, size = 0x8, scoped, tag = 'scoped memory for tpu_custom_call.1']
    #allocation7 [shape = 'u8[131072]{0}', space=vmem, size = 0x20000, scoped, tag = 'output window, operand 0']
    %9 = vsyncpa [#allocation3], 0
    %10 = vsyncpa [#allocation6], 0
    %s11 = scalar_lea.sflag [#allocation6], 1
    %12 = vsyncpa %s11, 0
    %13 = vsyncpa [#allocation4], 0
    %s14 = scalar_lea.sflag [#allocation4], 1
    %15 = vsyncpa %s14, 0
    loop: start=0, step=1, limit=4
    $region2: #{tpu_custom_call.1} parent=1 // loop_pre_header
      _
    $region3: #{tpu_custom_call.1} parent=1 // loop_header
      %s17 = sphi 0, %s21
      %p18 = scmp.ge.s32.totalorder %s17, 4
      %s24 = sphi 0, %s36
      %s25 = sphi 0, %s32
      %s26 = sphi 0, %s24
      %s27 = sphi 0, %s25
      %s28 = sphi 0, %s26
      %s29 = sphi 0, %s27
      %s39 = sphi 0, %s41
      %s42 = sphi 0, %s39
      %s43 = sphi 0, %s42
      %s59 = sphi 0, %s43
      %s65 = sphi 0, %s67
      %s68 = sphi 0, %s65
      %s69 = sphi 0, %s68
      %s85 = sphi 0, %s69
      %s91 = sphi 0, %s93
      %s94 = sphi 0, %s91
      %s95 = sphi 0, %s94
      %s111 = sphi 0, %s95
      %s117 = sphi 0, %s119
      %s120 = sphi 0, %s117
      %s121 = sphi 0, %s120
      %s137 = sphi 0, %s121
      %s145 = sphi 0, %s147
      %s148 = sphi 0, %s145
      %s149 = sphi 0, %s148
      %s165 = sphi 0, %s149
    $region4: #{tpu_custom_call.1} parent=1 // loop_header_branch
      %20 = sbr.rel (%p18) target = $region8
    $region5: #{tpu_custom_call.1} parent=1 // loop_body
      %s22 = ssub.s32 %s17, 1
      %s23 = ssub.s32 %s17, 2
      %s30 = sadd.s32 1, %s25
      %p31 = scmp.ge.s32.totalorder %s30, 2
      %s32 = scalar_select %p31, 0, %s30
      %s33 = sadd.s32 1, %s24
      %s34 = scalar_select %p31, %s33, %s24
      %p35 = scmp.ge.s32.totalorder %s34, 1
      %s36 = scalar_select %p35, 0, %s34
      %s37 = ssub.s32 %s24, %s36
      %p38 = scmp.eq.s32.totalorder %s37, 0
      %s40 = sadd.s32 %s39, 1
      %s41 = scalar_select %p38, %s39, %s40
      %p44 = pneg %p38
      %p45 = scmp.eq.s32.totalorder %s17, 1
      %p46 = por %p44, %p45
      %p47 = scmp.ne.s32.totalorder %s39, %s42
      %p48 = scmp.eq.s32.totalorder %s17, 0
      %p49 = por %p47, %p48
      %p50 = scmp.ne.s32.totalorder %s39, %s42
      %p51 = scmp.eq.s32.totalorder %s22, 1
      %p52 = por %p50, %p51
      %p53 = scmp.ne.s32.totalorder %s42, %s43
      %p54 = scmp.eq.s32.totalorder %s22, 0
      %p55 = por %p53, %p54
      %p56 = scmp.ne.s32.totalorder %s42, %s43
      %p57 = scmp.eq.s32.totalorder %s23, 1
      %p58 = por %p56, %p57
      %p60 = scmp.ne.s32.totalorder %s43, %s59
      %p61 = scmp.eq.s32.totalorder %s23, 0
      %p62 = por %p60, %p61
      %s63 = ssub.s32 %s25, %s32
      %p64 = scmp.eq.s32.totalorder %s63, 0
      %s66 = sadd.s32 %s65, 1
      %s67 = scalar_select %p64, %s65, %s66
      %p70 = pneg %p64
      %p71 = scmp.eq.s32.totalorder %s17, 1
      %p72 = por %p70, %p71
      %p73 = scmp.ne.s32.totalorder %s65, %s68
      %p74 = scmp.eq.s32.totalorder %s17, 0
      %p75 = por %p73, %p74
      %p76 = scmp.ne.s32.totalorder %s65, %s68
      %p77 = scmp.eq.s32.totalorder %s22, 1
      %p78 = por %p76, %p77
      %p79 = scmp.ne.s32.totalorder %s68, %s69
      %p80 = scmp.eq.s32.totalorder %s22, 0
      %p81 = por %p79, %p80
      %p82 = scmp.ne.s32.totalorder %s68, %s69
      %p83 = scmp.eq.s32.totalorder %s23, 1
      %p84 = por %p82, %p83
      %p86 = scmp.ne.s32.totalorder %s69, %s85
      %p87 = scmp.eq.s32.totalorder %s23, 0
      %p88 = por %p86, %p87
      %s89 = ssub.s32 %s25, %s32
      %p90 = scmp.eq.s32.totalorder %s89, 0
      %s92 = sadd.s32 %s91, 1
      %s93 = scalar_select %p90, %s91, %s92
      %p96 = pneg %p90
      %p97 = scmp.eq.s32.totalorder %s17, 1
      %p98 = por %p96, %p97
      %p99 = scmp.ne.s32.totalorder %s91, %s94
      %p100 = scmp.eq.s32.totalorder %s17, 0
      %p101 = por %p99, %p100
      %p102 = scmp.ne.s32.totalorder %s91, %s94
      %p103 = scmp.eq.s32.totalorder %s22, 1
      %p104 = por %p102, %p103
      %p105 = scmp.ne.s32.totalorder %s94, %s95
      %p106 = scmp.eq.s32.totalorder %s22, 0
      %p107 = por %p105, %p106
      %p108 = scmp.ne.s32.totalorder %s94, %s95
      %p109 = scmp.eq.s32.totalorder %s23, 1
      %p110 = por %p108, %p109
      %p112 = scmp.ne.s32.totalorder %s95, %s111
      %p113 = scmp.eq.s32.totalorder %s23, 0
      %p114 = por %p112, %p113
      %s115 = ssub.s32 %s25, %s32
      %p116 = scmp.eq.s32.totalorder %s115, 0
      %s118 = sadd.s32 %s117, 1
      %s119 = scalar_select %p116, %s117, %s118
      %p122 = pneg %p116
      %p123 = scmp.eq.s32.totalorder %s17, 1
      %p124 = por %p122, %p123
      %p125 = scmp.ne.s32.totalorder %s117, %s120
      %p126 = scmp.eq.s32.totalorder %s17, 0
      %p127 = por %p125, %p126
      %p128 = scmp.ne.s32.totalorder %s117, %s120
      %p129 = scmp.eq.s32.totalorder %s22, 1
      %p130 = por %p128, %p129
      %p131 = scmp.ne.s32.totalorder %s120, %s121
      %p132 = scmp.eq.s32.totalorder %s22, 0
      %p133 = por %p131, %p132
      %p134 = scmp.ne.s32.totalorder %s120, %s121
      %p135 = scmp.eq.s32.totalorder %s23, 1
      %p136 = por %p134, %p135
      %p138 = scmp.ne.s32.totalorder %s121, %s137
      %p139 = scmp.eq.s32.totalorder %s23, 0
      %p140 = por %p138, %p139
      %s141 = ssub.s32 %s24, %s36
      %s142 = ssub.s32 %s25, %s32
      %s143 = sor.u32 %s141, %s142
      %p144 = scmp.eq.s32.totalorder %s143, 0
      %s146 = sadd.s32 %s145, 1
      %s147 = scalar_select %p144, %s145, %s146
      %p150 = pneg %p144
      %p151 = scmp.eq.s32.totalorder %s17, 1
      %p152 = por %p150, %p151
      %p153 = scmp.ne.s32.totalorder %s145, %s148
      %p154 = scmp.eq.s32.totalorder %s17, 0
      %p155 = por %p153, %p154
      %p156 = scmp.ne.s32.totalorder %s145, %s148
      %p157 = scmp.eq.s32.totalorder %s22, 1
      %p158 = por %p156, %p157
      %p159 = scmp.ne.s32.totalorder %s148, %s149
      %p160 = scmp.eq.s32.totalorder %s22, 0
      %p161 = por %p159, %p160
      %p162 = scmp.ne.s32.totalorder %s148, %s149
      %p163 = scmp.eq.s32.totalorder %s23, 1
      %p164 = por %p162, %p163
      %p166 = scmp.ne.s32.totalorder %s149, %s165
      %p167 = scmp.eq.s32.totalorder %s23, 0
      %p168 = por %p166, %p167
      %p169 = scmp.le.s32.totalorder 1, %s17
      %p170 = scmp.lt.s32.totalorder %s17, 3
      %p171 = pnand %p169, %p170
      %p172 = pneg %p171
      // Predicated region
      $region9: #{tpu_custom_call.1} parent=5 // pred_check
        _
      $region10: #{tpu_custom_call.1} parent=5 // pred_check_branch
        %174 = sbr.rel (%p171) target = $region12
      $region11: #{tpu_custom_call.1} parent=5 // pred_region
        %s175 = ssub.s32 %s17, 1
        // Predicated region
        $region13: #{tpu_custom_call.1} parent=11 // pred_check
          %p176 = pneg %p55
        $region14: #{tpu_custom_call.1} parent=11 // pred_check_branch
          %178 = sbr.rel (%p176) target = $region16
        $region15: #{tpu_custom_call.1} parent=11 // pred_region
          %s179 = smul.u32 32, %s26
          %s181 = ssub.s32 6144, 6144
          %182 = vsyncadd [#allocation3], %s181
          %s183 = smul.addr %s179, 3
          %s184 = smul.addr %s183, 64
          %s185 = scalar_lea.hbm %s0, %s184
          %s186 = sshll.u32 [#allocation2], 4
          %s187 = int_to_ptr.vmem [resolvable:$true] %s186
          %192 = dma.hbm_to_vmem [thread:$0]  %s185, 6144, %s187, [#allocation3], 192, 192, 12
        $region16: #{tpu_custom_call.1} parent=11 // pred_fallthru
          _
      $region12: #{tpu_custom_call.1} parent=5 // pred_fallthru
        _
      %p193 = scmp.lt.s32.totalorder %s17, 2
      // Predicated region
      $region17: #{tpu_custom_call.1} parent=5 // pred_check
        %p194 = pneg %p193
      $region18: #{tpu_custom_call.1} parent=5 // pred_check_branch
        %196 = sbr.rel (%p194) target = $region20
      $region19: #{tpu_custom_call.1} parent=5 // pred_region
        // Predicated region
        $region21: #{tpu_custom_call.1} parent=19 // pred_check
          %p197 = pneg %p75
        $region22: #{tpu_custom_call.1} parent=19 // pred_check_branch
          %199 = sbr.rel (%p197) target = $region24
        $region23: #{tpu_custom_call.1} parent=19 // pred_region
          %s200 = sand.u32 %s65, 1
          %s201 = scalar_lea.sflag [#allocation6], %s200
          %s202 = sand.u32 %s65, 1
          %s203 = smul.addr %s202, 96
          %s204 = scalar_lea.vmem [#allocation5], %s203
          %s206 = ssub.s32 1536, 1536
          %207 = vsyncadd %s201, %s206
          %s208 = smul.addr %s25, 12
          %s209 = smul.addr %s208, 128
          %s210 = scalar_lea.hbm %s1, %s209
          %s211 = sshll.u32 %s204, 4
          %s212 = int_to_ptr.vmem [resolvable:$true] %s211
          %217 = dma.hbm_to_vmem [thread:$0]  %s210, 1536, %s212, %s201, 128, 128, 8
        $region24: #{tpu_custom_call.1} parent=19 // pred_fallthru
          _
        // Predicated region
        $region25: #{tpu_custom_call.1} parent=19 // pred_check
          %p218 = pneg %p101
        $region26: #{tpu_custom_call.1} parent=19 // pred_check_branch
          %220 = sbr.rel (%p218) target = $region28
        $region27: #{tpu_custom_call.1} parent=19 // pred_region
          %p221 = scmp.lt.s32.totalorder %s25, 1
          %s222 = scalar_select %p221, %s25, 1
          %s223 = scalar_lea.vmem %s2, %s222
        $region28: #{tpu_custom_call.1} parent=19 // pred_fallthru
          _
        // Predicated region
        $region29: #{tpu_custom_call.1} parent=19 // pred_check
          %p224 = pneg %p127
        $region30: #{tpu_custom_call.1} parent=19 // pred_check_branch
          %226 = sbr.rel (%p224) target = $region32
        $region31: #{tpu_custom_call.1} parent=19 // pred_region
          %p227 = scmp.lt.s32.totalorder %s25, 1
          %s228 = scalar_select %p227, %s25, 1
          %s229 = scalar_lea.vmem %s3, %s228
        $region32: #{tpu_custom_call.1} parent=19 // pred_fallthru
          _
      $region20: #{tpu_custom_call.1} parent=5 // pred_fallthru
        _
      %p230 = scmp.le.s32.totalorder 1, %s17
      %p231 = scmp.lt.s32.totalorder %s17, 3
      %p232 = pnand %p230, %p231
      %p233 = pneg %p232
      // Predicated region
      $region33: #{tpu_custom_call.1} parent=5 // pred_check
        _
      $region34: #{tpu_custom_call.1} parent=5 // pred_check_branch
        %235 = sbr.rel (%p232) target = $region36
      $region35: #{tpu_custom_call.1} parent=5 // pred_region
        %s236 = ssub.s32 %s17, 1
        // Predicated region
        $region37: #{tpu_custom_call.1} parent=35 // pred_check
          %p237 = pneg %p55
        $region38: #{tpu_custom_call.1} parent=35 // pred_check_branch
          %239 = sbr.rel (%p237) target = $region40
        $region39: #{tpu_custom_call.1} parent=35 // pred_region
          %240 = dma.done [#allocation3], 6144
        $region40: #{tpu_custom_call.1} parent=35 // pred_fallthru
          _
        %s241 = sand.u32 %s68, 1
        %s242 = scalar_lea.sflag [#allocation6], %s241
        %s243 = sand.u32 %s68, 1
        %s244 = smul.addr %s243, 96
        %s245 = scalar_lea.vmem [#allocation5], %s244
        // Predicated region
        $region41: #{tpu_custom_call.1} parent=35 // pred_check
          %p246 = pneg %p81
        $region42: #{tpu_custom_call.1} parent=35 // pred_check_branch
          %248 = sbr.rel (%p246) target = $region44
        $region43: #{tpu_custom_call.1} parent=35 // pred_region
          %249 = dma.done %s242, 1536
        $region44: #{tpu_custom_call.1} parent=35 // pred_fallthru
          _
        %p250 = pneg %p55
        %p251 = pneg %p52
        %s252 = sand.u32 %s68, 1
        %s253 = scalar_lea.sflag [#allocation6], %s252
        %s254 = sand.u32 %s68, 1
        %s255 = smul.addr %s254, 96
        %s256 = scalar_lea.vmem [#allocation5], %s255
        %p257 = pneg %p81
        %p258 = pneg %p78
        %p259 = scmp.lt.s32.totalorder %s27, 1
        %s260 = scalar_select %p259, %s27, 1
        %s261 = scalar_lea.vmem %s2, %s260
        %p262 = pneg %p107
        %p263 = pneg %p104
        %p264 = scmp.lt.s32.totalorder %s27, 1
        %s265 = scalar_select %p264, %s27, 1
        %s266 = scalar_lea.vmem %s3, %s265
        %p267 = pneg %p133
        %p268 = pneg %p130
        %p269 = pneg %p161
        %p270 = pneg %p158
        %s271 = sand.u32 %s148, 1
        %s272 = scalar_lea.sflag [#allocation4], %s271
        %s273 = sand.u32 %s148, 1
        %s274 = smul.addr %s273, 128
        %s275 = scalar_lea.vmem [#allocation7], %s274
        %s276 = smul.u32 32, %s26
        %p277 = scmp.lt.s32.totalorder %s27, 1
        %s278 = scalar_select %p277, %s27, 1
        %s279 = scalar_lea.vmem %s2, %s278
        %p280 = scmp.lt.s32.totalorder %s27, 1
        %s281 = scalar_select %p280, %s27, 1
        %s282 = scalar_lea.vmem %s3, %s281
        %s283 = smul.u32 32, %s26
        %v285 = vld [vmem:[%s245] sm:$0xff]
        %v286 = vld [vmem:[%s245 + $0x8] sm:$0xff]
        %v287 = vld [vmem:[%s245 + $0x10] sm:$0xff]
        %v288 = vld [vmem:[%s245 + $0x18] sm:$0xff]
        %v289 = vld [vmem:[%s245 + $0x20] sm:$0xff]
        %v290 = vld [vmem:[%s245 + $0x28] sm:$0xff]
        %v291 = vld [vmem:[%s245 + $0x30] sm:$0xff]
        %v292 = vld [vmem:[%s245 + $0x38] sm:$0xff]
        %v293 = vld [vmem:[%s245 + $0x40] sm:$0xff]
        %v294 = vld [vmem:[%s245 + $0x48] sm:$0xff]
        %v295 = vld [vmem:[%s245 + $0x50] sm:$0xff]
        %v296 = vld [vmem:[%s245 + $0x58] sm:$0xff]
        %v297 = vunpack.c.l.s8.bf16 %v285
        %v298 = vunpack.c.h.s8.bf16 %v285
        %v299 = vunpack.c.l.s8.bf16 %v286
        %v300 = vunpack.c.h.s8.bf16 %v286
        %v301 = vunpack.c.l.s8.bf16 %v287
        %v302 = vunpack.c.h.s8.bf16 %v287
        %v303 = vunpack.c.l.s8.bf16 %v288
        %v304 = vunpack.c.h.s8.bf16 %v288
        %v305 = vunpack.c.l.s8.bf16 %v289
        %v306 = vunpack.c.h.s8.bf16 %v289
        %v307 = vunpack.c.l.s8.bf16 %v290
        %v308 = vunpack.c.h.s8.bf16 %v290
        %v309 = vunpack.c.l.s8.bf16 %v291
        %v310 = vunpack.c.h.s8.bf16 %v291
        %v311 = vunpack.c.l.s8.bf16 %v292
        %v312 = vunpack.c.h.s8.bf16 %v292
        %v313 = vunpack.c.l.s8.bf16 %v293
        %v314 = vunpack.c.h.s8.bf16 %v293
        %v315 = vunpack.c.l.s8.bf16 %v294
        %v316 = vunpack.c.h.s8.bf16 %v294
        %v317 = vunpack.c.l.s8.bf16 %v295
        %v318 = vunpack.c.h.s8.bf16 %v295
        %v319 = vunpack.c.l.s8.bf16 %v296
        %v320 = vunpack.c.h.s8.bf16 %v296
        %v321 = vld [vmem:[#allocation2] sm:$0xff]
        %v322 = vld [vmem:[#allocation2 + $0x8] sm:$0xf]
        %v323 = vld [vmem:[#allocation2 + $0xc] sm:$0xff]
        %v324 = vld [vmem:[#allocation2 + $0x14] sm:$0xf]
        %v325 = vld [vmem:[#allocation2 + $0x18] sm:$0xff]
        %v326 = vld [vmem:[#allocation2 + $0x20] sm:$0xf]
        %v327 = vld [vmem:[#allocation2 + $0x24] sm:$0xff]
        %v328 = vld [vmem:[#allocation2 + $0x2c] sm:$0xf]
        %v329 = vld [vmem:[#allocation2 + $0x30] sm:$0xff]
        %v330 = vld [vmem:[#allocation2 + $0x38] sm:$0xf]
        %v331 = vld [vmem:[#allocation2 + $0x3c] sm:$0xff]
        %v332 = vld [vmem:[#allocation2 + $0x44] sm:$0xf]
        %v333 = vld [vmem:[#allocation2 + $0x48] sm:$0xff]
        %v334 = vld [vmem:[#allocation2 + $0x50] sm:$0xf]
        %v335 = vld [vmem:[#allocation2 + $0x54] sm:$0xff]
        %v336 = vld [vmem:[#allocation2 + $0x5c] sm:$0xf]
        %v337 = vld [vmem:[#allocation2 + $0x60] sm:$0xff]
        %v338 = vld [vmem:[#allocation2 + $0x68] sm:$0xf]
        %v339 = vld [vmem:[#allocation2 + $0x6c] sm:$0xff]
        %v340 = vld [vmem:[#allocation2 + $0x74] sm:$0xf]
        %v341 = vld [vmem:[#allocation2 + $0x78] sm:$0xff]
        %v342 = vld [vmem:[#allocation2 + $0x80] sm:$0xf]
        %v343 = vld [vmem:[#allocation2 + $0x84] sm:$0xff]
        %v344 = vld [vmem:[#allocation2 + $0x8c] sm:$0xf]
        %v345 = vld [vmem:[#allocation2 + $0x90] sm:$0xff]
        %v346 = vld [vmem:[#allocation2 + $0x98] sm:$0xf]
        %v347 = vld [vmem:[#allocation2 + $0x9c] sm:$0xff]
        %v348 = vld [vmem:[#allocation2 + $0xa4] sm:$0xf]
        %v349 = vld [vmem:[#allocation2 + $0xa8] sm:$0xff]
        %v350 = vld [vmem:[#allocation2 + $0xb0] sm:$0xf]
        %v351 = vld [vmem:[#allocation2 + $0xb4] sm:$0xff]
        %v352 = vld [vmem:[#allocation2 + $0xbc] sm:$0xf]
        %v353 = vld [vmem:[#allocation2 + $0xc0] sm:$0xff]
        %v354 = vld [vmem:[#allocation2 + $0xc8] sm:$0xf]
        %v355 = vld [vmem:[#allocation2 + $0xcc] sm:$0xff]
        %v356 = vld [vmem:[#allocation2 + $0xd4] sm:$0xf]
        %v357 = vld [vmem:[#allocation2 + $0xd8] sm:$0xff]
        %v358 = vld [vmem:[#allocation2 + $0xe0] sm:$0xf]
        %v359 = vld [vmem:[#allocation2 + $0xe4] sm:$0xff]
        %v360 = vld [vmem:[#allocation2 + $0xec] sm:$0xf]
        %v361 = vld [vmem:[#allocation2 + $0xf0] sm:$0xff]
        %v362 = vld [vmem:[#allocation2 + $0xf8] sm:$0xf]
        %v363 = vld [vmem:[#allocation2 + $0xfc] sm:$0xff]
        %v364 = vld [vmem:[#allocation2 + $0x104] sm:$0xf]
        %v365 = vld [vmem:[#allocation2 + $0x108] sm:$0xff]
        %v366 = vld [vmem:[#allocation2 + $0x110] sm:$0xf]
        %v367 = vld [vmem:[#allocation2 + $0x114] sm:$0xff]
        %v368 = vld [vmem:[#allocation2 + $0x11c] sm:$0xf]
        %v369 = vld [vmem:[#allocation2 + $0x120] sm:$0xff]
        %v370 = vld [vmem:[#allocation2 + $0x128] sm:$0xf]
        %v371 = vld [vmem:[#allocation2 + $0x12c] sm:$0xff]
        %v372 = vld [vmem:[#allocation2 + $0x134] sm:$0xf]
        %v373 = vld [vmem:[#allocation2 + $0x138] sm:$0xff]
        %v374 = vld [vmem:[#allocation2 + $0x140] sm:$0xf]
        %v375 = vld [vmem:[#allocation2 + $0x144] sm:$0xff]
        %v376 = vld [vmem:[#allocation2 + $0x14c] sm:$0xf]
        %v377 = vld [vmem:[#allocation2 + $0x150] sm:$0xff]
        %v378 = vld [vmem:[#allocation2 + $0x158] sm:$0xf]
        %v379 = vld [vmem:[#allocation2 + $0x15c] sm:$0xff]
        %v380 = vld [vmem:[#allocation2 + $0x164] sm:$0xf]
        %v381 = vld [vmem:[#allocation2 + $0x168] sm:$0xff]
        %v382 = vld [vmem:[#allocation2 + $0x170] sm:$0xf]
        %v383 = vld [vmem:[#allocation2 + $0x174] sm:$0xff]
        %v384 = vld [vmem:[#allocation2 + $0x17c] sm:$0xf]
        %v449 = vunpack.c.l.b16 %v321
        %v450 = vunpack.c.h.b16 %v321
        %v451 = vunpack.c.l.b16 %v322
        %v452 = vunpack.c.l.b16 %v323
        %v453 = vunpack.c.h.b16 %v323
        %v454 = vunpack.c.l.b16 %v324
        %v455 = vunpack.c.l.b16 %v325
        %v456 = vunpack.c.h.b16 %v325
        %v457 = vunpack.c.l.b16 %v326
        %v458 = vunpack.c.l.b16 %v327
        %v459 = vunpack.c.h.b16 %v327
        %v460 = vunpack.c.l.b16 %v328
        %v461 = vunpack.c.l.b16 %v329
        %v462 = vunpack.c.h.b16 %v329
        %v463 = vunpack.c.l.b16 %v330
        %v464 = vunpack.c.l.b16 %v331
        %v465 = vunpack.c.h.b16 %v331
        %v466 = vunpack.c.l.b16 %v332
        %v467 = vunpack.c.l.b16 %v333
        %v468 = vunpack.c.h.b16 %v333
        %v469 = vunpack.c.l.b16 %v334
        %v470 = vunpack.c.l.b16 %v335
        %v471 = vunpack.c.h.b16 %v335
        %v472 = vunpack.c.l.b16 %v336
        %v473 = vunpack.c.l.b16 %v337
        %v474 = vunpack.c.h.b16 %v337
        %v475 = vunpack.c.l.b16 %v338
        %v476 = vunpack.c.l.b16 %v339
        %v477 = vunpack.c.h.b16 %v339
        %v478 = vunpack.c.l.b16 %v340
        %v479 = vunpack.c.l.b16 %v341
        %v480 = vunpack.c.h.b16 %v341
        %v481 = vunpack.c.l.b16 %v342
        %v482 = vunpack.c.l.b16 %v343
        %v483 = vunpack.c.h.b16 %v343
        %v484 = vunpack.c.l.b16 %v344
        %v485 = vunpack.c.l.b16 %v345
        %v486 = vunpack.c.h.b16 %v345
        %v487 = vunpack.c.l.b16 %v346
        %v488 = vunpack.c.l.b16 %v347
        %v489 = vunpack.c.h.b16 %v347
        %v490 = vunpack.c.l.b16 %v348
        %v491 = vunpack.c.l.b16 %v349
        %v492 = vunpack.c.h.b16 %v349
        %v493 = vunpack.c.l.b16 %v350
        %v494 = vunpack.c.l.b16 %v351
        %v495 = vunpack.c.h.b16 %v351
        %v496 = vunpack.c.l.b16 %v352
        %v497 = vunpack.c.l.b16 %v353
        %v498 = vunpack.c.h.b16 %v353
        %v499 = vunpack.c.l.b16 %v354
        %v500 = vunpack.c.l.b16 %v355
        %v501 = vunpack.c.h.b16 %v355
        %v502 = vunpack.c.l.b16 %v356
        %v503 = vunpack.c.l.b16 %v357
        %v504 = vunpack.c.h.b16 %v357
        %v505 = vunpack.c.l.b16 %v358
        %v506 = vunpack.c.l.b16 %v359
        %v507 = vunpack.c.h.b16 %v359
        %v508 = vunpack.c.l.b16 %v360
        %v509 = vunpack.c.l.b16 %v361
        %v510 = vunpack.c.h.b16 %v361
        %v511 = vunpack.c.l.b16 %v362
        %v512 = vunpack.c.l.b16 %v363
        %v513 = vunpack.c.h.b16 %v363
        %v514 = vunpack.c.l.b16 %v364
        %v515 = vunpack.c.l.b16 %v365
        %v516 = vunpack.c.h.b16 %v365
        %v517 = vunpack.c.l.b16 %v366
        %v518 = vunpack.c.l.b16 %v367
        %v519 = vunpack.c.h.b16 %v367
        %v520 = vunpack.c.l.b16 %v368
        %v521 = vunpack.c.l.b16 %v369
        %v522 = vunpack.c.h.b16 %v369
        %v523 = vunpack.c.l.b16 %v370
        %v524 = vunpack.c.l.b16 %v371
        %v525 = vunpack.c.h.b16 %v371
        %v526 = vunpack.c.l.b16 %v372
        %v527 = vunpack.c.l.b16 %v373
        %v528 = vunpack.c.h.b16 %v373
        %v529 = vunpack.c.l.b16 %v374
        %v530 = vunpack.c.l.b16 %v375
        %v531 = vunpack.c.h.b16 %v375
        %v532 = vunpack.c.l.b16 %v376
        %v533 = vunpack.c.l.b16 %v377
        %v534 = vunpack.c.h.b16 %v377
        %v535 = vunpack.c.l.b16 %v378
        %v536 = vunpack.c.l.b16 %v379
        %v537 = vunpack.c.h.b16 %v379
        %v538 = vunpack.c.l.b16 %v380
        %v539 = vunpack.c.l.b16 %v381
        %v540 = vunpack.c.h.b16 %v381
        %v541 = vunpack.c.l.b16 %v382
        %v542 = vunpack.c.l.b16 %v383
        %v543 = vunpack.c.h.b16 %v383
        %v544 = vunpack.c.l.b16 %v384
        %v545 = vpack.c.b16 %v452, %v449
        %v546 = vpack.c.b16 %v453, %v450
        %v547 = vpack.c.b16 %v454, %v451
        %v548 = vpack.c.b16 %v458, %v455
        %v549 = vpack.c.b16 %v459, %v456
        %v550 = vpack.c.b16 %v460, %v457
        %v551 = vpack.c.b16 %v464, %v461
        %v552 = vpack.c.b16 %v465, %v462
        %v553 = vpack.c.b16 %v466, %v463
        %v554 = vpack.c.b16 %v470, %v467
        %v555 = vpack.c.b16 %v471, %v468
        %v556 = vpack.c.b16 %v472, %v469
        %v557 = vpack.c.b16 %v476, %v473
        %v558 = vpack.c.b16 %v477, %v474
        %v559 = vpack.c.b16 %v478, %v475
        %v560 = vpack.c.b16 %v482, %v479
        %v561 = vpack.c.b16 %v483, %v480
        %v562 = vpack.c.b16 %v484, %v481
        %v563 = vpack.c.b16 %v488, %v485
        %v564 = vpack.c.b16 %v489, %v486
        %v565 = vpack.c.b16 %v490, %v487
        %v566 = vpack.c.b16 %v494, %v491
        %v567 = vpack.c.b16 %v495, %v492
        %v568 = vpack.c.b16 %v496, %v493
        %v569 = vpack.c.b16 %v500, %v497
        %v570 = vpack.c.b16 %v501, %v498
        %v571 = vpack.c.b16 %v502, %v499
        %v572 = vpack.c.b16 %v506, %v503
        %v573 = vpack.c.b16 %v507, %v504
        %v574 = vpack.c.b16 %v508, %v505
        %v575 = vpack.c.b16 %v512, %v509
        %v576 = vpack.c.b16 %v513, %v510
        %v577 = vpack.c.b16 %v514, %v511
        %v578 = vpack.c.b16 %v518, %v515
        %v579 = vpack.c.b16 %v519, %v516
        %v580 = vpack.c.b16 %v520, %v517
        %v581 = vpack.c.b16 %v524, %v521
        %v582 = vpack.c.b16 %v525, %v522
        %v583 = vpack.c.b16 %v526, %v523
        %v584 = vpack.c.b16 %v530, %v527
        %v585 = vpack.c.b16 %v531, %v528
        %v586 = vpack.c.b16 %v532, %v529
        %v587 = vpack.c.b16 %v536, %v533
        %v588 = vpack.c.b16 %v537, %v534
        %v589 = vpack.c.b16 %v538, %v535
        %v590 = vpack.c.b16 %v542, %v539
        %v591 = vpack.c.b16 %v543, %v540
        %v592 = vpack.c.b16 %v544, %v541
        %641 = vmatprep.subr.bf16.mxu0 0
        %642 = vmatpush1.bf16.msra.mxu0 %v297
        %643 = vmatprep.subr.bf16.mxu0 0
        %644 = vmatpush1.bf16.msra.mxu0 %v298
        %645 = vmatprep.subr.bf16.mxu0 0
        %646 = vmatpush1.bf16.msra.mxu0 %v299
        %647 = vmatprep.subr.bf16.mxu0 0
        %648 = vmatpush1.bf16.msra.mxu0 %v300
        %649 = vmatprep.subr.bf16.mxu0 0
        %650 = vmatpush1.bf16.msra.mxu0 %v301
        %651 = vmatprep.subr.bf16.mxu0 0
        %652 = vmatpush1.bf16.msra.mxu0 %v302
        %653 = vmatprep.subr.bf16.mxu0 0
        %654 = vmatpush1.bf16.msra.mxu0 %v303
        %655 = vmatprep.subr.bf16.mxu0 0
        %656 = vmatpush1.bf16.msra.mxu0 %v304
        %657 = vmatprep.subr.bf16.mxu0 0
        %658 = vmatpush1.bf16.msra.mxu0 %v305
        %659 = vmatprep.subr.bf16.mxu0 0
        %660 = vmatpush1.bf16.msra.mxu0 %v306
        %661 = vmatprep.subr.bf16.mxu0 0
        %662 = vmatpush1.bf16.msra.mxu0 %v307
        %663 = vmatprep.subr.bf16.mxu0 0
        %664 = vmatpush1.bf16.msra.mxu0 %v308
        %665 = vmatprep.subr.bf16.mxu0 0
        %666 = vmatpush1.bf16.msra.mxu0 %v309
        %667 = vmatprep.subr.bf16.mxu0 0
        %668 = vmatpush1.bf16.msra.mxu0 %v310
        %669 = vmatprep.subr.bf16.mxu0 0
        %670 = vmatpush1.bf16.msra.mxu0 %v311
        %671 = vmatprep.subr.bf16.mxu0 0
        %672 = vmatpush1.bf16.msra.mxu0 %v312
        %673 = vmatprep.mubr.bf16.mxu0 %v546
        %674 = vmatmul.mubr.bf16.gmra.mrb[0].mxu0 %v545
        %v675 = vpop.f32.mrb[0].mxu0
        %v676 = vadd.f32 0.0, %v675
        %v677 = vpop.f32.mrb[0].mxu0
        %v678 = vpop.f32.mrb[0].mxu0
        %v679 = vadd.f32 0.0, %v678
        %v680 = vpop.f32.mrb[0].mxu0
        %681 = vmatprep.mubr.bf16.mxu0 %v549
        %682 = vmatmul.mubr.bf16.gmra.mrb[0].mxu0 %v548
        %v683 = vpop.f32.mrb[0].mxu0
        %v684 = vadd.f32 0.0, %v683
        %v685 = vpop.f32.mrb[0].mxu0
        %v686 = vpop.f32.mrb[0].mxu0
        %v687 = vadd.f32 0.0, %v686
        %v688 = vpop.f32.mrb[0].mxu0
        %689 = vmatprep.mubr.bf16.mxu0 %v552
        %690 = vmatmul.mubr.bf16.gmra.mrb[0].mxu0 %v551
        %v691 = vpop.f32.mrb[0].mxu0
        %v692 = vadd.f32 0.0, %v691
        %v693 = vpop.f32.mrb[0].mxu0
        %v694 = vpop.f32.mrb[0].mxu0
        %v695 = vadd.f32 0.0, %v694
        %v696 = vpop.f32.mrb[0].mxu0
        %697 = vmatprep.mubr.bf16.mxu0 %v555
        %698 = vmatmul.mubr.bf16.gmra.mrb[0].mxu0 %v554
        %v699 = vpop.f32.mrb[0].mxu0
        %v700 = vadd.f32 0.0, %v699
        %v701 = vpop.f32.mrb[0].mxu0
        %v702 = vpop.f32.mrb[0].mxu0
        %v703 = vadd.f32 0.0, %v702
        %v704 = vpop.f32.mrb[0].mxu0
        %705 = vmatprep.mubr.bf16.mxu0 %v558
        %706 = vmatmul.mubr.bf16.gmra.mrb[0].mxu0 %v557
        %v707 = vpop.f32.mrb[0].mxu0
        %v708 = vadd.f32 0.0, %v707
        %v709 = vpop.f32.mrb[0].mxu0
        %v710 = vpop.f32.mrb[0].mxu0
        %v711 = vadd.f32 0.0, %v710
        %v712 = vpop.f32.mrb[0].mxu0
        %713 = vmatprep.mubr.bf16.mxu0 %v561
        %714 = vmatmul.mubr.bf16.gmra.mrb[0].mxu0 %v560
        %v715 = vpop.f32.mrb[0].mxu0
        %v716 = vadd.f32 0.0, %v715
        %v717 = vpop.f32.mrb[0].mxu0
        %v718 = vpop.f32.mrb[0].mxu0
        %v719 = vadd.f32 0.0, %v718
        %v720 = vpop.f32.mrb[0].mxu0
        %721 = vmatprep.mubr.bf16.mxu0 %v564
        %722 = vmatmul.mubr.bf16.gmra.mrb[0].mxu0 %v563
        %v723 = vpop.f32.mrb[0].mxu0
        %v724 = vadd.f32 0.0, %v723
        %v725 = vpop.f32.mrb[0].mxu0
        %v726 = vpop.f32.mrb[0].mxu0
        %v727 = vadd.f32 0.0, %v726
        %v728 = vpop.f32.mrb[0].mxu0
        %729 = vmatprep.mubr.bf16.mxu0 %v567
        %730 = vmatmul.mubr.bf16.gmra.mrb[0].mxu0 %v566
        %v731 = vpop.f32.mrb[0].mxu0
        %v732 = vadd.f32 0.0, %v731
        %v733 = vpop.f32.mrb[0].mxu0
        %v734 = vpop.f32.mrb[0].mxu0
        %v735 = vadd.f32 0.0, %v734
        %v736 = vpop.f32.mrb[0].mxu0
        %737 = vmatprep.mubr.bf16.mxu0 %v570
        %738 = vmatmul.mubr.bf16.gmra.mrb[0].mxu0 %v569
        %v739 = vpop.f32.mrb[0].mxu0
        %v740 = vadd.f32 0.0, %v739
        %v741 = vpop.f32.mrb[0].mxu0
        %v742 = vpop.f32.mrb[0].mxu0
        %v743 = vadd.f32 0.0, %v742
        %v744 = vpop.f32.mrb[0].mxu0
        %745 = vmatprep.mubr.bf16.mxu0 %v573
        %746 = vmatmul.mubr.bf16.gmra.mrb[0].mxu0 %v572
        %v747 = vpop.f32.mrb[0].mxu0
        %v748 = vadd.f32 0.0, %v747
        %v749 = vpop.f32.mrb[0].mxu0
        %v750 = vpop.f32.mrb[0].mxu0
        %v751 = vadd.f32 0.0, %v750
        %v752 = vpop.f32.mrb[0].mxu0
        %753 = vmatprep.mubr.bf16.mxu0 %v576
        %754 = vmatmul.mubr.bf16.gmra.mrb[0].mxu0 %v575
        %v755 = vpop.f32.mrb[0].mxu0
        %v756 = vadd.f32 0.0, %v755
        %v757 = vpop.f32.mrb[0].mxu0
        %v758 = vpop.f32.mrb[0].mxu0
        %v759 = vadd.f32 0.0, %v758
        %v760 = vpop.f32.mrb[0].mxu0
        %761 = vmatprep.mubr.bf16.mxu0 %v579
        %762 = vmatmul.mubr.bf16.gmra.mrb[0].mxu0 %v578
        %v763 = vpop.f32.mrb[0].mxu0
        %v764 = vadd.f32 0.0, %v763
        %v765 = vpop.f32.mrb[0].mxu0
        %v766 = vpop.f32.mrb[0].mxu0
        %v767 = vadd.f32 0.0, %v766
        %v768 = vpop.f32.mrb[0].mxu0
        %769 = vmatprep.mubr.bf16.mxu0 %v582
        %770 = vmatmul.mubr.bf16.gmra.mrb[0].mxu0 %v581
        %v771 = vpop.f32.mrb[0].mxu0
        %v772 = vadd.f32 0.0, %v771
        %v773 = vpop.f32.mrb[0].mxu0
        %v774 = vpop.f32.mrb[0].mxu0
        %v775 = vadd.f32 0.0, %v774
        %v776 = vpop.f32.mrb[0].mxu0
        %777 = vmatprep.mubr.bf16.mxu0 %v585
        %778 = vmatmul.mubr.bf16.gmra.mrb[0].mxu0 %v584
        %v779 = vpop.f32.mrb[0].mxu0
        %v780 = vadd.f32 0.0, %v779
        %v781 = vpop.f32.mrb[0].mxu0
        %v782 = vpop.f32.mrb[0].mxu0
        %v783 = vadd.f32 0.0, %v782
        %v784 = vpop.f32.mrb[0].mxu0
        %785 = vmatprep.mubr.bf16.mxu0 %v588
        %786 = vmatmul.mubr.bf16.gmra.mrb[0].mxu0 %v587
        %v787 = vpop.f32.mrb[0].mxu0
        %v788 = vadd.f32 0.0, %v787
        %v789 = vpop.f32.mrb[0].mxu0
        %v790 = vpop.f32.mrb[0].mxu0
        %v791 = vadd.f32 0.0, %v790
        %v792 = vpop.f32.mrb[0].mxu0
        %793 = vmatprep.mubr.bf16.mxu0 %v591
        %794 = vmatmul.mubr.bf16.gmra.mrb[0].mxu0 %v590
        %v795 = vpop.f32.mrb[0].mxu0
        %v796 = vadd.f32 0.0, %v795
        %v797 = vpop.f32.mrb[0].mxu0
        %v798 = vpop.f32.mrb[0].mxu0
        %v799 = vadd.f32 0.0, %v798
        %v800 = vpop.f32.mrb[0].mxu0
        %801 = vdwg.mxu0
        %802 = vmatprep.subr.bf16.mxu0 0
        %803 = vmatpush1.bf16.msra.mxu0 %v313
        %804 = vmatprep.subr.bf16.mxu0 0
        %805 = vmatpush1.bf16.msra.mxu0 %v314
        %806 = vmatprep.subr.bf16.mxu0 0
        %807 = vmatpush1.bf16.msra.mxu0 %v315
        %808 = vmatprep.subr.bf16.mxu0 0
        %809 = vmatpush1.bf16.msra.mxu0 %v316
        %810 = vmatprep.subr.bf16.mxu0 0
        %811 = vmatpush1.bf16.msra.mxu0 %v317
        %812 = vmatprep.subr.bf16.mxu0 0
        %813 = vmatpush1.bf16.msra.mxu0 %v318
        %814 = vmatprep.subr.bf16.mxu0 0
        %815 = vmatpush1.bf16.msra.mxu0 %v319
        %816 = vmatprep.subr.bf16.mxu0 0
        %817 = vmatpush1.bf16.msra.mxu0 %v320
        %818 = vmatprep.subr.bf16.mxu0 0
        %819 = vmatpush1.bf16.msra.mxu0 0
        %820 = vmatprep.subr.bf16.mxu0 0
        %821 = vmatpush1.bf16.msra.mxu0 0
        %822 = vmatprep.subr.bf16.mxu0 0
        %823 = vmatpush1.bf16.msra.mxu0 0
        %824 = vmatprep.subr.bf16.mxu0 0
        %825 = vmatpush1.bf16.msra.mxu0 0
        %826 = vmatprep.subr.bf16.mxu0 0
        %827 = vmatpush1.bf16.msra.mxu0 0
        %828 = vmatprep.subr.bf16.mxu0 0
        %829 = vmatpush1.bf16.msra.mxu0 0
        %830 = vmatprep.subr.bf16.mxu0 0
        %831 = vmatpush1.bf16.msra.mxu0 0
        %832 = vmatprep.subr.bf16.mxu0 0
        %833 = vmatpush1.bf16.msra.mxu0 0
        %834 = vmatprep.mubr.bf16.mxu0 0
        %835 = vmatmul.mubr.bf16.gmra.mrb[0].mxu0 %v547
        %v836 = vpop.f32.mrb[0].mxu0
        %v837 = vadd.f32 %v676, %v836
        %v838 = vpop.f32.mrb[0].mxu0
        %v839 = vpop.f32.mrb[0].mxu0
        %v840 = vadd.f32 %v679, %v839
        %v841 = vpop.f32.mrb[0].mxu0
        %842 = vmatprep.mubr.bf16.mxu0 0
        %843 = vmatmul.mubr.bf16.gmra.mrb[0].mxu0 %v550
        %v844 = vpop.f32.mrb[0].mxu0
        %v845 = vadd.f32 %v684, %v844
        %v846 = vpop.f32.mrb[0].mxu0
        %v847 = vpop.f32.mrb[0].mxu0
        %v848 = vadd.f32 %v687, %v847
        %v849 = vpop.f32.mrb[0].mxu0
        %850 = vmatprep.mubr.bf16.mxu0 0
        %851 = vmatmul.mubr.bf16.gmra.mrb[0].mxu0 %v553
        %v852 = vpop.f32.mrb[0].mxu0
        %v853 = vadd.f32 %v692, %v852
        %v854 = vpop.f32.mrb[0].mxu0
        %v855 = vpop.f32.mrb[0].mxu0
        %v856 = vadd.f32 %v695, %v855
        %v857 = vpop.f32.mrb[0].mxu0
        %858 = vmatprep.mubr.bf16.mxu0 0
        %859 = vmatmul.mubr.bf16.gmra.mrb[0].mxu0 %v556
        %v860 = vpop.f32.mrb[0].mxu0
        %v861 = vadd.f32 %v700, %v860
        %v862 = vpop.f32.mrb[0].mxu0
        %v863 = vpop.f32.mrb[0].mxu0
        %v864 = vadd.f32 %v703, %v863
        %v865 = vpop.f32.mrb[0].mxu0
        %866 = vmatprep.mubr.bf16.mxu0 0
        %867 = vmatmul.mubr.bf16.gmra.mrb[0].mxu0 %v559
        %v868 = vpop.f32.mrb[0].mxu0
        %v869 = vadd.f32 %v708, %v868
        %v870 = vpop.f32.mrb[0].mxu0
        %v871 = vpop.f32.mrb[0].mxu0
        %v872 = vadd.f32 %v711, %v871
        %v873 = vpop.f32.mrb[0].mxu0
        %874 = vmatprep.mubr.bf16.mxu0 0
        %875 = vmatmul.mubr.bf16.gmra.mrb[0].mxu0 %v562
        %v876 = vpop.f32.mrb[0].mxu0
        %v877 = vadd.f32 %v716, %v876
        %v878 = vpop.f32.mrb[0].mxu0
        %v879 = vpop.f32.mrb[0].mxu0
        %v880 = vadd.f32 %v719, %v879
        %v881 = vpop.f32.mrb[0].mxu0
        %882 = vmatprep.mubr.bf16.mxu0 0
        %883 = vmatmul.mubr.bf16.gmra.mrb[0].mxu0 %v565
        %v884 = vpop.f32.mrb[0].mxu0
        %v885 = vadd.f32 %v724, %v884
        %v886 = vpop.f32.mrb[0].mxu0
        %v887 = vpop.f32.mrb[0].mxu0
        %v888 = vadd.f32 %v727, %v887
        %v889 = vpop.f32.mrb[0].mxu0
        %890 = vmatprep.mubr.bf16.mxu0 0
        %891 = vmatmul.mubr.bf16.gmra.mrb[0].mxu0 %v568
        %v892 = vpop.f32.mrb[0].mxu0
        %v893 = vadd.f32 %v732, %v892
        %v894 = vpop.f32.mrb[0].mxu0
        %v895 = vpop.f32.mrb[0].mxu0
        %v896 = vadd.f32 %v735, %v895
        %v897 = vpop.f32.mrb[0].mxu0
        %898 = vmatprep.mubr.bf16.mxu0 0
        %899 = vmatmul.mubr.bf16.gmra.mrb[0].mxu0 %v571
        %v900 = vpop.f32.mrb[0].mxu0
        %v901 = vadd.f32 %v740, %v900
        %v902 = vpop.f32.mrb[0].mxu0
        %v903 = vpop.f32.mrb[0].mxu0
        %v904 = vadd.f32 %v743, %v903
        %v905 = vpop.f32.mrb[0].mxu0
        %906 = vmatprep.mubr.bf16.mxu0 0
        %907 = vmatmul.mubr.bf16.gmra.mrb[0].mxu0 %v574
        %v908 = vpop.f32.mrb[0].mxu0
        %v909 = vadd.f32 %v748, %v908
        %v910 = vpop.f32.mrb[0].mxu0
        %v911 = vpop.f32.mrb[0].mxu0
        %v912 = vadd.f32 %v751, %v911
        %v913 = vpop.f32.mrb[0].mxu0
        %914 = vmatprep.mubr.bf16.mxu0 0
        %915 = vmatmul.mubr.bf16.gmra.mrb[0].mxu0 %v577
        %v916 = vpop.f32.mrb[0].mxu0
        %v917 = vadd.f32 %v756, %v916
        %v918 = vpop.f32.mrb[0].mxu0
        %v919 = vpop.f32.mrb[0].mxu0
        %v920 = vadd.f32 %v759, %v919
        %v921 = vpop.f32.mrb[0].mxu0
        %922 = vmatprep.mubr.bf16.mxu0 0
        %923 = vmatmul.mubr.bf16.gmra.mrb[0].mxu0 %v580
        %v924 = vpop.f32.mrb[0].mxu0
        %v925 = vadd.f32 %v764, %v924
        %v926 = vpop.f32.mrb[0].mxu0
        %v927 = vpop.f32.mrb[0].mxu0
        %v928 = vadd.f32 %v767, %v927
        %v929 = vpop.f32.mrb[0].mxu0
        %930 = vmatprep.mubr.bf16.mxu0 0
        %931 = vmatmul.mubr.bf16.gmra.mrb[0].mxu0 %v583
        %v932 = vpop.f32.mrb[0].mxu0
        %v933 = vadd.f32 %v772, %v932
        %v934 = vpop.f32.mrb[0].mxu0
        %v935 = vpop.f32.mrb[0].mxu0
        %v936 = vadd.f32 %v775, %v935
        %v937 = vpop.f32.mrb[0].mxu0
        %938 = vmatprep.mubr.bf16.mxu0 0
        %939 = vmatmul.mubr.bf16.gmra.mrb[0].mxu0 %v586
        %v940 = vpop.f32.mrb[0].mxu0
        %v941 = vadd.f32 %v780, %v940
        %v942 = vpop.f32.mrb[0].mxu0
        %v943 = vpop.f32.mrb[0].mxu0
        %v944 = vadd.f32 %v783, %v943
        %v945 = vpop.f32.mrb[0].mxu0
        %946 = vmatprep.mubr.bf16.mxu0 0
        %947 = vmatmul.mubr.bf16.gmra.mrb[0].mxu0 %v589
        %v948 = vpop.f32.mrb[0].mxu0
        %v949 = vadd.f32 %v788, %v948
        %v950 = vpop.f32.mrb[0].mxu0
        %v951 = vpop.f32.mrb[0].mxu0
        %v952 = vadd.f32 %v791, %v951
        %v953 = vpop.f32.mrb[0].mxu0
        %954 = vmatprep.mubr.bf16.mxu0 0
        %955 = vmatmul.mubr.bf16.gmra.mrb[0].mxu0 %v592
        %v956 = vpop.f32.mrb[0].mxu0
        %v957 = vadd.f32 %v796, %v956
        %v958 = vpop.f32.mrb[0].mxu0
        %v959 = vpop.f32.mrb[0].mxu0
        %v960 = vadd.f32 %v799, %v959
        %v961 = vpop.f32.mrb[0].mxu0
        %962 = vdwg.mxu0
        %v963 = vld [vmem:[%s279] sm:$0x1]
        %v965 = vlaneseq
        %v966 = vshrl.u32 %v965, 7
        %v967 = vsub.s32 0, %v966
        %v968 = vrot.slane %v963, %v967
        %v970 = vmul.f32 %v837, %v968
        %v971 = vmul.f32 %v840, %v968
        %v972 = vmul.f32 %v845, %v968
        %v973 = vmul.f32 %v848, %v968
        %v974 = vmul.f32 %v853, %v968
        %v975 = vmul.f32 %v856, %v968
        %v976 = vmul.f32 %v861, %v968
        %v977 = vmul.f32 %v864, %v968
        %v978 = vmul.f32 %v869, %v968
        %v979 = vmul.f32 %v872, %v968
        %v980 = vmul.f32 %v877, %v968
        %v981 = vmul.f32 %v880, %v968
        %v982 = vmul.f32 %v885, %v968
        %v983 = vmul.f32 %v888, %v968
        %v984 = vmul.f32 %v893, %v968
        %v985 = vmul.f32 %v896, %v968
        %v986 = vmul.f32 %v901, %v968
        %v987 = vmul.f32 %v904, %v968
        %v988 = vmul.f32 %v909, %v968
        %v989 = vmul.f32 %v912, %v968
        %v990 = vmul.f32 %v917, %v968
        %v991 = vmul.f32 %v920, %v968
        %v992 = vmul.f32 %v925, %v968
        %v993 = vmul.f32 %v928, %v968
        %v994 = vmul.f32 %v933, %v968
        %v995 = vmul.f32 %v936, %v968
        %v996 = vmul.f32 %v941, %v968
        %v997 = vmul.f32 %v944, %v968
        %v998 = vmul.f32 %v949, %v968
        %v999 = vmul.f32 %v952, %v968
        %v1000 = vmul.f32 %v957, %v968
        %v1001 = vmul.f32 %v960, %v968
        %v1002 = vld [vmem:[%s282] sm:$0x1]
        %v1004 = vlaneseq
        %v1005 = vshrl.u32 %v1004, 7
        %v1006 = vsub.s32 0, %v1005
        %v1007 = vrot.slane %v1002, %v1006
        %v1009 = vadd.f32 %v970, %v1007
        %v1010 = vadd.f32 %v971, %v1007
        %v1011 = vadd.f32 %v972, %v1007
        %v1012 = vadd.f32 %v973, %v1007
        %v1013 = vadd.f32 %v974, %v1007
        %v1014 = vadd.f32 %v975, %v1007
        %v1015 = vadd.f32 %v976, %v1007
        %v1016 = vadd.f32 %v977, %v1007
        %v1017 = vadd.f32 %v978, %v1007
        %v1018 = vadd.f32 %v979, %v1007
        %v1019 = vadd.f32 %v980, %v1007
        %v1020 = vadd.f32 %v981, %v1007
        %v1021 = vadd.f32 %v982, %v1007
        %v1022 = vadd.f32 %v983, %v1007
        %v1023 = vadd.f32 %v984, %v1007
        %v1024 = vadd.f32 %v985, %v1007
        %v1025 = vadd.f32 %v986, %v1007
        %v1026 = vadd.f32 %v987, %v1007
        %v1027 = vadd.f32 %v988, %v1007
        %v1028 = vadd.f32 %v989, %v1007
        %v1029 = vadd.f32 %v990, %v1007
        %v1030 = vadd.f32 %v991, %v1007
        %v1031 = vadd.f32 %v992, %v1007
        %v1032 = vadd.f32 %v993, %v1007
        %v1033 = vadd.f32 %v994, %v1007
        %v1034 = vadd.f32 %v995, %v1007
        %v1035 = vadd.f32 %v996, %v1007
        %v1036 = vadd.f32 %v997, %v1007
        %v1037 = vadd.f32 %v998, %v1007
        %v1038 = vadd.f32 %v999, %v1007
        %v1039 = vadd.f32 %v1000, %v1007
        %v1040 = vadd.f32 %v1001, %v1007
        %v1041 = vpack.c.bf16 %v1010, %v1009
        %v1042 = vpack.c.bf16 %v1012, %v1011
        %v1043 = vpack.c.bf16 %v1014, %v1013
        %v1044 = vpack.c.bf16 %v1016, %v1015
        %v1045 = vpack.c.bf16 %v1018, %v1017
        %v1046 = vpack.c.bf16 %v1020, %v1019
        %v1047 = vpack.c.bf16 %v1022, %v1021
        %v1048 = vpack.c.bf16 %v1024, %v1023
        %v1049 = vpack.c.bf16 %v1026, %v1025
        %v1050 = vpack.c.bf16 %v1028, %v1027
        %v1051 = vpack.c.bf16 %v1030, %v1029
        %v1052 = vpack.c.bf16 %v1032, %v1031
        %v1053 = vpack.c.bf16 %v1034, %v1033
        %v1054 = vpack.c.bf16 %v1036, %v1035
        %v1055 = vpack.c.bf16 %v1038, %v1037
        %v1056 = vpack.c.bf16 %v1040, %v1039
        %v1073 = vunpack.c.l.b16 %v1041
        %v1074 = vunpack.c.h.b16 %v1041
        %v1075 = vunpack.c.l.b16 %v1042
        %v1076 = vunpack.c.h.b16 %v1042
        %v1077 = vunpack.c.l.b16 %v1043
        %v1078 = vunpack.c.h.b16 %v1043
        %v1079 = vunpack.c.l.b16 %v1044
        %v1080 = vunpack.c.h.b16 %v1044
        %v1081 = vunpack.c.l.b16 %v1045
        %v1082 = vunpack.c.h.b16 %v1045
        %v1083 = vunpack.c.l.b16 %v1046
        %v1084 = vunpack.c.h.b16 %v1046
        %v1085 = vunpack.c.l.b16 %v1047
        %v1086 = vunpack.c.h.b16 %v1047
        %v1087 = vunpack.c.l.b16 %v1048
        %v1088 = vunpack.c.h.b16 %v1048
        %v1089 = vunpack.c.l.b16 %v1049
        %v1090 = vunpack.c.h.b16 %v1049
        %v1091 = vunpack.c.l.b16 %v1050
        %v1092 = vunpack.c.h.b16 %v1050
        %v1093 = vunpack.c.l.b16 %v1051
        %v1094 = vunpack.c.h.b16 %v1051
        %v1095 = vunpack.c.l.b16 %v1052
        %v1096 = vunpack.c.h.b16 %v1052
        %v1097 = vunpack.c.l.b16 %v1053
        %v1098 = vunpack.c.h.b16 %v1053
        %v1099 = vunpack.c.l.b16 %v1054
        %v1100 = vunpack.c.h.b16 %v1054
        %v1101 = vunpack.c.l.b16 %v1055
        %v1102 = vunpack.c.h.b16 %v1055
        %v1103 = vunpack.c.l.b16 %v1056
        %v1104 = vunpack.c.h.b16 %v1056
        %v1105 = vpack.c.b16 %v1073, %v1073
        %v1106 = vpack.c.b16 %v1074, %v1074
        %v1107 = vpack.c.b16 %v1075, %v1075
        %v1108 = vpack.c.b16 %v1076, %v1076
        %v1109 = vpack.c.b16 %v1077, %v1077
        %v1110 = vpack.c.b16 %v1078, %v1078
        %v1111 = vpack.c.b16 %v1079, %v1079
        %v1112 = vpack.c.b16 %v1080, %v1080
        %v1113 = vpack.c.b16 %v1081, %v1081
        %v1114 = vpack.c.b16 %v1082, %v1082
        %v1115 = vpack.c.b16 %v1083, %v1083
        %v1116 = vpack.c.b16 %v1084, %v1084
        %v1117 = vpack.c.b16 %v1085, %v1085
        %v1118 = vpack.c.b16 %v1086, %v1086
        %v1119 = vpack.c.b16 %v1087, %v1087
        %v1120 = vpack.c.b16 %v1088, %v1088
        %v1121 = vpack.c.b16 %v1089, %v1089
        %v1122 = vpack.c.b16 %v1090, %v1090
        %v1123 = vpack.c.b16 %v1091, %v1091
        %v1124 = vpack.c.b16 %v1092, %v1092
        %v1125 = vpack.c.b16 %v1093, %v1093
        %v1126 = vpack.c.b16 %v1094, %v1094
        %v1127 = vpack.c.b16 %v1095, %v1095
        %v1128 = vpack.c.b16 %v1096, %v1096
        %v1129 = vpack.c.b16 %v1097, %v1097
        %v1130 = vpack.c.b16 %v1098, %v1098
        %v1131 = vpack.c.b16 %v1099, %v1099
        %v1132 = vpack.c.b16 %v1100, %v1100
        %v1133 = vpack.c.b16 %v1101, %v1101
        %v1134 = vpack.c.b16 %v1102, %v1102
        %v1135 = vpack.c.b16 %v1103, %v1103
        %v1136 = vpack.c.b16 %v1104, %v1104
        %1169 = vst [vmem:[%s275] sm:$0xf] %v1105
        %1170 = vst [vmem:[%s275 + $0x4] sm:$0xf] %v1106
        %1171 = vst [vmem:[%s275 + $0x8] sm:$0xf] %v1107
        %1172 = vst [vmem:[%s275 + $0xc] sm:$0xf] %v1108
        %1173 = vst [vmem:[%s275 + $0x10] sm:$0xf] %v1109
        %1174 = vst [vmem:[%s275 + $0x14] sm:$0xf] %v1110
        %1175 = vst [vmem:[%s275 + $0x18] sm:$0xf] %v1111
        %1176 = vst [vmem:[%s275 + $0x1c] sm:$0xf] %v1112
        %1177 = vst [vmem:[%s275 + $0x20] sm:$0xf] %v1113
        %1178 = vst [vmem:[%s275 + $0x24] sm:$0xf] %v1114
        %1179 = vst [vmem:[%s275 + $0x28] sm:$0xf] %v1115
        %1180 = vst [vmem:[%s275 + $0x2c] sm:$0xf] %v1116
        %1181 = vst [vmem:[%s275 + $0x30] sm:$0xf] %v1117
        %1182 = vst [vmem:[%s275 + $0x34] sm:$0xf] %v1118
        %1183 = vst [vmem:[%s275 + $0x38] sm:$0xf] %v1119
        %1184 = vst [vmem:[%s275 + $0x3c] sm:$0xf] %v1120
        %1185 = vst [vmem:[%s275 + $0x40] sm:$0xf] %v1121
        %1186 = vst [vmem:[%s275 + $0x44] sm:$0xf] %v1122
        %1187 = vst [vmem:[%s275 + $0x48] sm:$0xf] %v1123
        %1188 = vst [vmem:[%s275 + $0x4c] sm:$0xf] %v1124
        %1189 = vst [vmem:[%s275 + $0x50] sm:$0xf] %v1125
        %1190 = vst [vmem:[%s275 + $0x54] sm:$0xf] %v1126
        %1191 = vst [vmem:[%s275 + $0x58] sm:$0xf] %v1127
        %1192 = vst [vmem:[%s275 + $0x5c] sm:$0xf] %v1128
        %1193 = vst [vmem:[%s275 + $0x60] sm:$0xf] %v1129
        %1194 = vst [vmem:[%s275 + $0x64] sm:$0xf] %v1130
        %1195 = vst [vmem:[%s275 + $0x68] sm:$0xf] %v1131
        %1196 = vst [vmem:[%s275 + $0x6c] sm:$0xf] %v1132
        %1197 = vst [vmem:[%s275 + $0x70] sm:$0xf] %v1133
        %1198 = vst [vmem:[%s275 + $0x74] sm:$0xf] %v1134
        %1199 = vst [vmem:[%s275 + $0x78] sm:$0xf] %v1135
        %1200 = vst [vmem:[%s275 + $0x7c] sm:$0xf] %v1136
        %s1201 = sand.u32 %s148, 1
        %s1202 = scalar_lea.sflag [#allocation4], %s1201
        %s1203 = sand.u32 %s148, 1
        %s1204 = smul.addr %s1203, 128
        %s1205 = scalar_lea.vmem [#allocation7], %s1204
        // Predicated region
        $region45: #{tpu_custom_call.1} parent=35 // pred_check
          %p1206 = pneg %p158
        $region46: #{tpu_custom_call.1} parent=35 // pred_check_branch
          %1208 = sbr.rel (%p1206) target = $region48
        $region47: #{tpu_custom_call.1} parent=35 // pred_region
          %s1209 = smul.u32 32, %s26
          %s1211 = ssub.s32 2048, 2048
          %1212 = vsyncadd %s1202, %s1211
          %s1213 = smul.addr %s1209, 2
          %s1214 = sadd.s32 %s27, %s1213
          %s1215 = smul.addr %s1214, 64
          %s1216 = scalar_lea.hbm %s4, %s1215
          %s1217 = sshll.u32 %s1205, 4
          %s1218 = int_to_ptr.vmem [resolvable:$true] %s1217
          %1223 = dma.vmem_to_hbm [thread:$0]  %s1218, 2048, %s1216, %s1202, 64, 128, 4
        $region48: #{tpu_custom_call.1} parent=35 // pred_fallthru
          _
      $region36: #{tpu_custom_call.1} parent=5 // pred_fallthru
        _
      %p1224 = scmp.le.s32.totalorder 2, %s17
      // Predicated region
      $region49: #{tpu_custom_call.1} parent=5 // pred_check
        %p1225 = pneg %p1224
      $region50: #{tpu_custom_call.1} parent=5 // pred_check_branch
        %1227 = sbr.rel (%p1225) target = $region52
      $region51: #{tpu_custom_call.1} parent=5 // pred_region
        %s1228 = ssub.s32 %s17, 2
        // Predicated region
        $region53: #{tpu_custom_call.1} parent=51 // pred_check
          %p1229 = pneg %p164
        $region54: #{tpu_custom_call.1} parent=51 // pred_check_branch
          %1231 = sbr.rel (%p1229) target = $region56
        $region55: #{tpu_custom_call.1} parent=51 // pred_region
          %s1232 = sand.u32 %s149, 1
          %s1233 = scalar_lea.sflag [#allocation4], %s1232
          %s1234 = sand.u32 %s149, 1
          %s1235 = smul.addr %s1234, 128
          %s1236 = scalar_lea.vmem [#allocation7], %s1235
          %1237 = dma.done %s1233, 2048
        $region56: #{tpu_custom_call.1} parent=51 // pred_fallthru
          _
      $region52: #{tpu_custom_call.1} parent=5 // pred_fallthru
        _
    $region6: #{tpu_custom_call.1} parent=1 // loop_footer
      %s21 = sadd.s32 1, %s17
    $region7: #{tpu_custom_call.1} parent=1 // loop_footer_branch
      %16 = sbr.rel target = $region3
    $region8: #{tpu_custom_call.1} parent=1 // loop_exit
      _
    %1238 = vsyncpa [#allocation3], 1
    %s1239 = scalar_lea.sflag [#allocation3], 1
    %1240 = vsyncpa %s1239, 1
    %1241 = vsyncpa [#allocation6], 1
    %s1242 = scalar_lea.sflag [#allocation6], 1
    %1243 = vsyncpa %s1242, 1
    %1244 = vsyncpa [#allocation4], 1
    %s1245 = scalar_lea.sflag [#allocation4], 1
    %1246 = vsyncpa %s1245, 1

</llo_original>
